<compile_context>
chip_gen: v5e
topology: v5e:2x2
jax: 0.10.0
libtpu: 0.0.40
codegen_flags: <defaults>
</compile_context>

<pallas_src>
import functools

import jax
import jax.numpy as jnp
from jax.experimental import pallas as pl
from jax.experimental.pallas import tpu as pltpu


def _ce_label_smooth_kernel(pred_ref, tgt_ref, out_ref, *, label_smooth, class_num):
    pred = pred_ref[...].astype(jnp.float32)       # [R, M] upcast in-register
    tgt = tgt_ref[...]                             # [R, 1] int32 (-1 == padded row)
    r, m = pred.shape

    # (1, M) class-id row; the compare broadcasts it against tgt, so no (R, M)
    # iota temporary is ever materialized.  Mask computed once, used once.
    cls_row = jax.lax.broadcasted_iota(jnp.int32, (1, m), 1)
    tgt_mask = cls_row == tgt                      # [R, M]

    # log_softmax pieces WITHOUT materializing the full [R, M] logprobs:
    #   logpt         = shifted[target] - lse
    #   sum(logprobs) = sum(shifted)    - M * lse
    row_max = jnp.max(pred, axis=1, keepdims=True)                          # [R, 1]
    shifted = pred - row_max                                                # [R, M]
    lse = jnp.log(jnp.sum(jnp.exp(shifted), axis=1, keepdims=True))         # [R, 1]
    gathered = jnp.sum(jnp.where(tgt_mask, shifted, 0.0),
                       axis=1, keepdims=True)                               # [R, 1]
    sum_shifted = jnp.sum(shifted, axis=1, keepdims=True)                   # [R, 1]

    logpt = gathered - lse                                                  # [R, 1]
    sum_logprobs = sum_shifted - jnp.float32(m) * lse                       # [R, 1]
    pt = jnp.exp(logpt)                                                     # [R, 1]
    smooth_dot = (1.0 - label_smooth) * logpt + (label_smooth / class_num) * sum_logprobs
    per_sample = -(1.0 - pt) * smooth_dot                                   # [R, 1]

    # padded rows (tgt == -1) contribute exactly 0 to the batch sum
    out_ref[...] = jnp.where(tgt >= 0, per_sample, 0.0)


def _ce_plain_kernel(pred_ref, tgt_ref, out_ref):
    pred = pred_ref[...].astype(jnp.float32)       # [R, M]
    tgt = tgt_ref[...]                             # [R, 1] int32 (-1 == padded row)
    r, m = pred.shape

    cls_row = jax.lax.broadcasted_iota(jnp.int32, (1, m), 1)
    tgt_mask = cls_row == tgt
    gathered = jnp.sum(jnp.where(tgt_mask, pred, 0.0),
                       axis=1, keepdims=True)                               # [R, 1]

    # log(sum(exp(pred + 1e-12))) == max-shifted logsumexp (the +1e-12 is an
    # f32 no-op); the shifted form also avoids exp overflow.
    row_max = jnp.max(pred, axis=1, keepdims=True)
    lse = row_max + jnp.log(jnp.sum(jnp.exp(pred - row_max), axis=1, keepdims=True))

    per_sample = -gathered + lse                                            # [R, 1]
    out_ref[...] = jnp.where(tgt >= 0, per_sample, 0.0)


def _vmem_limit_bytes():
    """Generation-aware scoped-VMEM limit (v5e/v6e: 128 MiB physical, v7x: 64 MiB)."""
    try:
        cap = pltpu.get_tpu_info().vmem_capacity_bytes
    except Exception:
        cap = 128 * 1024 * 1024
    if cap >= 128 * 1024 * 1024:
        return 96 * 1024 * 1024            # v5e / v6e: use most of the 128 MiB
    return min(48 * 1024 * 1024, (cap * 3) // 4)   # v7x: stay well inside 64 MiB


def _pick_tile_rows(n, m, in_itemsize, vmem_limit):
    """Largest row tile whose per-step working set fits comfortably in VMEM.

    Per grid step we hold 2 double-buffered native-dtype logits blocks plus
    ~4 live f32 [R, M] temporaries (upcast pred, shifted, exp(shifted), mask).
    """
    per_row = m * (2 * in_itemsize + 4 * 4)
    budget_rows = max(8, int(0.6 * vmem_limit) // per_row)
    if n <= budget_rows:
        return n                            # single block covering the whole batch
    return max(8, budget_rows - budget_rows % 8)


def ce_loss(pred, target, *, label_smooth=None, class_num=100, tile_rows=None):
    """pred: [N, M] float (any float dtype), target: [N] int -> scalar f32 mean loss."""
    n, m = pred.shape
    if label_smooth is not None:
        # The smoothed-target dot runs over all M columns; it matches the
        # PyTorch reference only when the smoothing constant uses the same M.
        assert int(class_num) == m, (class_num, m)

    vmem_limit = _vmem_limit_bytes()
    if tile_rows is None:
        tile_rows = _pick_tile_rows(n, m, pred.dtype.itemsize, vmem_limit)

    # Pad the batch up to a tile multiple instead of one huge fallback block:
    # padded rows get target = -1 and produce exactly 0 loss inside the kernel.
    num_tiles = -(-n // tile_rows)
    n_pad = num_tiles * tile_rows
    tgt = target.astype(jnp.int32)
    if n_pad != n:
        pred = jnp.pad(pred, ((0, n_pad - n), (0, 0)))
        tgt = jnp.pad(tgt, (0, n_pad - n), constant_values=-1)
    tgt2d = tgt.reshape(n_pad, 1)

    if label_smooth is not None:
        kernel = functools.partial(
            _ce_label_smooth_kernel,
            label_smooth=float(label_smooth),
            class_num=int(class_num),
        )
    else:
        kernel = _ce_plain_kernel

    per_sample = pl.pallas_call(
        kernel,
        out_shape=jax.ShapeDtypeStruct((n_pad, 1), jnp.float32),
        grid=(num_tiles,),
        in_specs=[
            # Logits streamed in their native dtype (bf16 stays bf16 over HBM).
            # Bump to pipeline_mode=pl.Buffered(3) only if an xprof trace still
            # shows exposed DMA after the tile-size fix.
            pl.BlockSpec((tile_rows, m), lambda i: (i, 0)),
            pl.BlockSpec((tile_rows, 1), lambda i: (i, 0)),
        ],
        # One output block per grid step keeps the row axis "parallel" so v7x
        # can shard tiles across both TensorCores; the per-sample column is
        # ~1/M of the logits bytes, so its lane-1 stores are negligible.
        out_specs=pl.BlockSpec((tile_rows, 1), lambda i: (i, 0)),
        compiler_params=pltpu.CompilerParams(
            # TODO(synk): verify in a v7x trace that this axis is split across
            # both TensorCores; if not, switch to pltpu.CORE_PARALLEL here.
            dimension_semantics=("parallel",),
            vmem_limit_bytes=vmem_limit,
        ),
    )(pred, tgt2d)

    # padded rows are exact zeros, so summing the padded column is safe
    return jnp.sum(per_sample) / jnp.float32(n)


def _reference(pred, target, label_smooth, class_num):
    eps = 1e-12
    pred = pred.astype(jnp.float32)
    if label_smooth is not None:
        logprobs = jax.nn.log_softmax(pred, axis=1)
        onehot = jax.nn.one_hot(target, class_num, dtype=pred.dtype)
        logpt = jnp.take_along_axis(logprobs, target[:, None], axis=1)[:, 0]
        pt = jnp.exp(logpt)
        smoothed = (1.0 - label_smooth) * onehot + label_smooth / class_num
        loss = -1.0 * (1.0 - pt) * jnp.sum(smoothed * logprobs, axis=1)
    else:
        gathered = jnp.take_along_axis(pred, target[:, None], axis=1)[:, 0]
        loss = -1.0 * gathered + jnp.log(jnp.sum(jnp.exp(pred + eps), axis=1))
    return jnp.mean(loss)


if __name__ == "__main__":
    key = jax.random.PRNGKey(0)
    k_pred, k_tgt = jax.random.split(key)

    N, CLASS_NUM = 32, 100
    pred = jax.random.normal(k_pred, (N, CLASS_NUM), dtype=jnp.float32)
    target = jax.random.randint(k_tgt, (N,), 0, CLASS_NUM, dtype=jnp.int32)

    # label-smoothed branch, auto tile sizing (single block here)
    loss_ls = ce_loss(pred, target, label_smooth=0.1, class_num=CLASS_NUM)
    jax.block_until_ready(loss_ls)
    ref_ls = _reference(pred, target, 0.1, CLASS_NUM)

    # plain branch, multi-tile grid (4 tiles of 8 rows)
    loss_plain = ce_loss(pred, target, label_smooth=None, class_num=CLASS_NUM, tile_rows=8)
    jax.block_until_ready(loss_plain)
    ref_plain = _reference(pred, target, None, CLASS_NUM)

    # bf16 input + multi-tile + ragged batch (exercises the row-padding path)
    N2 = 30
    pred_bf16 = pred[:N2].astype(jnp.bfloat16)
    tgt2 = target[:N2]
    loss_ls_bf16 = ce_loss(pred_bf16, tgt2, label_smooth=0.1, class_num=CLASS_NUM, tile_rows=8)
    jax.block_until_ready(loss_ls_bf16)
    ref_ls_bf16 = _reference(pred_bf16.astype(jnp.float32), tgt2, 0.1, CLASS_NUM)

    assert jnp.allclose(loss_ls, ref_ls, atol=1e-5, rtol=1e-5), (loss_ls, ref_ls)
    assert jnp.allclose(loss_plain, ref_plain, atol=1e-5, rtol=1e-5), (loss_plain, ref_plain)
    assert jnp.allclose(loss_ls_bf16, ref_ls_bf16, atol=1e-4, rtol=1e-4), (loss_ls_bf16, ref_ls_bf16)

    print("KERNEL_OK")
</pallas_src>

<mosaic_0001>
module attributes {stable_mosaic.version = 11 : i64} {
  func.func @_ce_label_smooth_kernel(%arg0: i32, %arg1: memref<32x100xf32, #tpu.memory_space<vmem>>, %arg2: memref<32x1xi32, #tpu.memory_space<vmem>>, %arg3: memref<32x1xf32, #tpu.memory_space<vmem>>) attributes {dimension_semantics = [#tpu.dimension_semantics<parallel>], iteration_bounds = array<i64: 1>, scalar_prefetch = 0 : i64, scratch_operands = 0 : i64, tpu.core_type = #tpu.core_type<tc>, window_params = [{transform_indices = @transform_0, window_bounds = array<i64: 32, 100>}, {transform_indices = @transform_1, window_bounds = array<i64: 32, 1>}, {transform_indices = @transform_2, window_bounds = array<i64: 32, 1>}]} {
    %c0 = arith.constant 0 : index
    %c0_0 = arith.constant 0 : index
    %0 = vector.load %arg1[%c0, %c0_0] : memref<32x100xf32, #tpu.memory_space<vmem>>, vector<32x100xf32>
    %c0_1 = arith.constant 0 : index
    %c0_2 = arith.constant 0 : index
    %1 = vector.load %arg2[%c0_1, %c0_2] : memref<32x1xi32, #tpu.memory_space<vmem>>, vector<32x1xi32>
    %2 = tpu.iota {dimensions = array<i32: 1>} : vector<1x100xi32>
    %3 = vector.broadcast %2 : vector<1x100xi32> to vector<32x100xi32>
    %4 = vector.broadcast %1 : vector<32x1xi32> to vector<32x100xi32>
    %5 = arith.cmpi eq, %3, %4 : vector<32x100xi32>
    %cst = arith.constant dense<0xFF800000> : vector<32xf32>
    %6 = vector.multi_reduction <maximumf>, %0, %cst [1] : vector<32x100xf32> to vector<32xf32>
    %7 = vector.shape_cast %6 : vector<32xf32> to vector<32x1xf32>
    %8 = vector.broadcast %7 : vector<32x1xf32> to vector<32x100xf32>
    %9 = arith.subf %0, %8 : vector<32x100xf32>
    %10 = math.exp %9 : vector<32x100xf32>
    %cst_3 = arith.constant dense<0.000000e+00> : vector<32xf32>
    %11 = vector.multi_reduction <add>, %10, %cst_3 [1] : vector<32x100xf32> to vector<32xf32>
    %12 = vector.shape_cast %11 : vector<32xf32> to vector<32x1xf32>
    %13 = math.log %12 : vector<32x1xf32>
    %cst_4 = arith.constant 0.000000e+00 : f32
    %14 = vector.broadcast %cst_4 : f32 to vector<32x100xf32>
    %15 = arith.select %5, %9, %14 : vector<32x100xi1>, vector<32x100xf32>
    %cst_5 = arith.constant dense<0.000000e+00> : vector<32xf32>
    %16 = vector.multi_reduction <add>, %15, %cst_5 [1] : vector<32x100xf32> to vector<32xf32>
    %17 = vector.shape_cast %16 : vector<32xf32> to vector<32x1xf32>
    %cst_6 = arith.constant dense<0.000000e+00> : vector<32xf32>
    %18 = vector.multi_reduction <add>, %9, %cst_6 [1] : vector<32x100xf32> to vector<32xf32>
    %19 = vector.shape_cast %18 : vector<32xf32> to vector<32x1xf32>
    %20 = arith.subf %17, %13 : vector<32x1xf32>
    %cst_7 = arith.constant 1.000000e+02 : f32
    %21 = vector.broadcast %cst_7 : f32 to vector<32x1xf32>
    %22 = arith.mulf %21, %13 : vector<32x1xf32>
    %23 = arith.subf %19, %22 : vector<32x1xf32>
    %24 = math.exp %20 : vector<32x1xf32>
    %cst_8 = arith.constant 0.899999976 : f32
    %25 = vector.broadcast %cst_8 : f32 to vector<32x1xf32>
    %26 = arith.mulf %25, %20 : vector<32x1xf32>
    %cst_9 = arith.constant 1.000000e-03 : f32
    %27 = vector.broadcast %cst_9 : f32 to vector<32x1xf32>
    %28 = arith.mulf %27, %23 : vector<32x1xf32>
    %29 = arith.addf %26, %28 : vector<32x1xf32>
    %cst_10 = arith.constant 1.000000e+00 : f32
    %30 = vector.broadcast %cst_10 : f32 to vector<32x1xf32>
    %31 = arith.subf %30, %24 : vector<32x1xf32>
    %cst_11 = arith.constant 0.000000e+00 : f32
    %32 = vector.broadcast %cst_11 : f32 to vector<32x1xf32>
    %33 = arith.subf %32, %31 : vector<32x1xf32>
    %34 = arith.mulf %33, %29 : vector<32x1xf32>
    %c0_i32 = arith.constant 0 : i32
    %35 = vector.broadcast %c0_i32 : i32 to vector<32x1xi32>
    %36 = arith.cmpi sge, %1, %35 : vector<32x1xi32>
    %cst_12 = arith.constant 0.000000e+00 : f32
    %37 = vector.broadcast %cst_12 : f32 to vector<32x1xf32>
    %38 = arith.select %36, %34, %37 : vector<32x1xi1>, vector<32x1xf32>
    %c0_13 = arith.constant 0 : index
    %c0_14 = arith.constant 0 : index
    %39 = vector.load %arg3[%c0_13, %c0_14] : memref<32x1xf32, #tpu.memory_space<vmem>>, vector<32x1xf32>
    tpu.vector_store %arg3[%c0_13, %c0_14], %38 {strides = array<i32>} : memref<32x1xf32, #tpu.memory_space<vmem>>, vector<32x1xf32>,
    return
  }
  func.func @transform_0(%arg0: i32) -> (i32, i32) {
    %c0_i32 = arith.constant 0 : i32
    %c0_i32_0 = arith.constant 0 : i32
    return %arg0, %c0_i32 : i32, i32
  }
  func.func @transform_1(%arg0: i32) -> (i32, i32) {
    %c0_i32 = arith.constant 0 : i32
    %c0_i32_0 = arith.constant 0 : i32
    return %arg0, %c0_i32 : i32, i32
  }
  func.func @transform_2(%arg0: i32) -> (i32, i32) {
    %c0_i32 = arith.constant 0 : i32
    %c0_i32_0 = arith.constant 0 : i32
    return %arg0, %c0_i32 : i32, i32
  }
}

</mosaic_0001>

<llo_original>
// kernel: tpu_custom_call.1
$region0: #{tpu_custom_call.1}
  #allocation0 [shape = 'u32[]', space=smem, size = 0x4, offset = 0x4, fixed_abs, tag = 'smem constant byte address 0x4 - core index']
  #allocation1 [shape = 'u32[72,128]{1,0:T(1,128)}', space=vmem, size = 0x9000, scoped, tag = 'internal scratch']
  %s0 = inlined_call_operand.vmem [shape: f32[32,100], index: 0, kind: input, shape index: {}]
  %s1 = inlined_call_operand.vmem [shape: s32[32,1], index: 1, kind: input, shape index: {}]
  %s2 = inlined_call_operand.vmem [shape: f32[32,1], index: 2, kind: output, shape index: {}]
  %s3 = sld [smem:[#allocation0]]
  $region18: #{tpu_custom_call.1} parent=0
    _
  %s5 = ssub.s32 1, %s3
  %s6 = scalar_select 0, %s5, %s3
  // Predicated region
  $region2: #{tpu_custom_call.1} parent=0 // pred_check
    _
  $region3: #{tpu_custom_call.1} parent=0 // pred_check_branch
    %8 = sbr.rel (0) target = $region5
  $region4: #{tpu_custom_call.1} parent=0 // pred_region
    _
  $region5: #{tpu_custom_call.1} parent=0 // pred_fallthru
    _
  // Predicated region
  $region6: #{tpu_custom_call.1} parent=0 // pred_check
    _
  $region7: #{tpu_custom_call.1} parent=0 // pred_check_branch
    %10 = sbr.rel (0) target = $region9
  $region8: #{tpu_custom_call.1} parent=0 // pred_region
    _
  $region9: #{tpu_custom_call.1} parent=0 // pred_fallthru
    _
  %v11 = vld [vmem:[%s0] sm:$0xff]
  %v12 = vld [vmem:[%s0 + $0x8] sm:$0xff]
  %v13 = vld [vmem:[%s0 + $0x10] sm:$0xff]
  %v14 = vld [vmem:[%s0 + $0x18] sm:$0xff]
  %v15 = vld [vmem:[%s1] sm:$0xff]
  %v16 = vld [vmem:[%s1 + $0x8] sm:$0xff]
  %v17 = vld [vmem:[%s1 + $0x10] sm:$0xff]
  %v18 = vld [vmem:[%s1 + $0x18] sm:$0xff]
  %v19 = vlaneseq
  %v20 = vand.u32 %v19, 127
  %21 = vset.pattern.permute.xlu0 0
  %22 = vperm.xlu0 %21, %v15
  %v23 = vpop.permute.xlu0 %22
  %24 = vset.pattern.permute.xlu0 0
  %25 = vperm.xlu0 %24, %v16
  %v26 = vpop.permute.xlu0 %25
  %27 = vset.pattern.permute.xlu0 0
  %28 = vperm.xlu0 %27, %v17
  %v29 = vpop.permute.xlu0 %28
  %30 = vset.pattern.permute.xlu0 0
  %31 = vperm.xlu0 %30, %v18
  %v32 = vpop.permute.xlu0 %31
  %vm33 = vcmp.eq.s32.totalorder %v20, %v23
  %vm34 = vcmp.eq.s32.totalorder %v20, %v26
  %vm35 = vcmp.eq.s32.totalorder %v20, %v29
  %vm36 = vcmp.eq.s32.totalorder %v20, %v32
  %vm37 = vcmask 818176
  %v38 = vsel %vm37, %v11, -inf
  %39 = vmax.xlane.f32.xlu0 %v38
  %v40 = vpop.xlane.xlu0 %39
  %v41 = vsel %vm37, %v12, -inf
  %42 = vmax.xlane.f32.xlu0 %v41
  %v43 = vpop.xlane.xlu0 %42
  %v44 = vsel %vm37, %v13, -inf
  %45 = vmax.xlane.f32.xlu0 %v44
  %v46 = vpop.xlane.xlu0 %45
  %v47 = vsel %vm37, %v14, -inf
  %48 = vmax.xlane.f32.xlu0 %v47
  %v49 = vpop.xlane.xlu0 %48
  %v50 = vsub.f32 %v11, %v40
  %v51 = vsub.f32 %v12, %v43
  %v52 = vsub.f32 %v13, %v46
  %v53 = vsub.f32 %v14, %v49
  %v54 = vmul.f32 %v50, 1.442695
  %v55 = vpow.pop %v54
  %v56 = vmul.f32 %v51, 1.442695
  %v57 = vpow.pop %v56
  %v58 = vmul.f32 %v52, 1.442695
  %v59 = vpow.pop %v58
  %v60 = vmul.f32 %v53, 1.442695
  %v61 = vpow.pop %v60
  %v62 = vsel %vm37, %v55, 0.0
  %63 = vadd.xlane.f32.xlu0 %v62
  %v64 = vpop.xlane.xlu0 %63
  %v65 = vsel %vm37, %v57, 0.0
  %66 = vadd.xlane.f32.xlu0 %v65
  %v67 = vpop.xlane.xlu0 %66
  %v68 = vsel %vm37, %v59, 0.0
  %69 = vadd.xlane.f32.xlu0 %v68
  %v70 = vpop.xlane.xlu0 %69
  %v71 = vsel %vm37, %v61, 0.0
  %72 = vadd.xlane.f32.xlu0 %v71
  %v73 = vpop.xlane.xlu0 %72
  %v74 = vlog2.pop %v64
  %v75 = vmul.f32 %v74, 0.6931472
  %v76 = vlog2.pop %v67
  %v77 = vmul.f32 %v76, 0.6931472
  %v78 = vlog2.pop %v70
  %v79 = vmul.f32 %v78, 0.6931472
  %v80 = vlog2.pop %v73
  %v81 = vmul.f32 %v80, 0.6931472
  %v82 = vsel %vm33, %v50, 0.0
  %v83 = vsel %vm34, %v51, 0.0
  %v84 = vsel %vm35, %v52, 0.0
  %v85 = vsel %vm36, %v53, 0.0
  %v86 = vsel %vm37, %v82, 0.0
  %87 = vadd.xlane.f32.xlu0 %v86
  %v88 = vpop.xlane.xlu0 %87
  %v89 = vsel %vm37, %v83, 0.0
  %90 = vadd.xlane.f32.xlu0 %v89
  %v91 = vpop.xlane.xlu0 %90
  %v92 = vsel %vm37, %v84, 0.0
  %93 = vadd.xlane.f32.xlu0 %v92
  %v94 = vpop.xlane.xlu0 %93
  %v95 = vsel %vm37, %v85, 0.0
  %96 = vadd.xlane.f32.xlu0 %v95
  %v97 = vpop.xlane.xlu0 %96
  %v98 = vsel %vm37, %v50, 0.0
  %99 = vadd.xlane.f32.xlu0 %v98
  %v100 = vpop.xlane.xlu0 %99
  %v101 = vsel %vm37, %v51, 0.0
  %102 = vadd.xlane.f32.xlu0 %v101
  %v103 = vpop.xlane.xlu0 %102
  %v104 = vsel %vm37, %v52, 0.0
  %105 = vadd.xlane.f32.xlu0 %v104
  %v106 = vpop.xlane.xlu0 %105
  %v107 = vsel %vm37, %v53, 0.0
  %108 = vadd.xlane.f32.xlu0 %v107
  %v109 = vpop.xlane.xlu0 %108
  %v110 = vsub.f32 %v88, %v75
  %v111 = vsub.f32 %v91, %v77
  %v112 = vsub.f32 %v94, %v79
  %v113 = vsub.f32 %v97, %v81
  %v114 = vmul.f32 %v75, 100.0
  %v115 = vmul.f32 %v77, 100.0
  %v116 = vmul.f32 %v79, 100.0
  %v117 = vmul.f32 %v81, 100.0
  %v118 = vsub.f32 %v100, %v114
  %v119 = vsub.f32 %v103, %v115
  %v120 = vsub.f32 %v106, %v116
  %v121 = vsub.f32 %v109, %v117
  %v122 = vmul.f32 %v110, 1.442695
  %v123 = vpow.pop %v122
  %v124 = vmul.f32 %v111, 1.442695
  %v125 = vpow.pop %v124
  %v126 = vmul.f32 %v112, 1.442695
  %v127 = vpow.pop %v126
  %v128 = vmul.f32 %v113, 1.442695
  %v129 = vpow.pop %v128
  %v130 = vmul.f32 %v110, 0.9
  %v131 = vmul.f32 %v111, 0.9
  %v132 = vmul.f32 %v112, 0.9
  %v133 = vmul.f32 %v113, 0.9
  %v134 = vmul.f32 %v118, 0.001
  %v135 = vmul.f32 %v119, 0.001
  %v136 = vmul.f32 %v120, 0.001
  %v137 = vmul.f32 %v121, 0.001
  %v138 = vadd.f32 %v130, %v134
  %v139 = vadd.f32 %v131, %v135
  %v140 = vadd.f32 %v132, %v136
  %v141 = vadd.f32 %v133, %v137
  %v142 = vsub.f32 1.0, %v123
  %v143 = vsub.f32 1.0, %v125
  %v144 = vsub.f32 1.0, %v127
  %v145 = vsub.f32 1.0, %v129
  %v146 = vsub.f32 0.0, %v142
  %v147 = vsub.f32 0.0, %v143
  %v148 = vsub.f32 0.0, %v144
  %v149 = vsub.f32 0.0, %v145
  %v150 = vmul.f32 %v146, %v138
  %v151 = vmul.f32 %v147, %v139
  %v152 = vmul.f32 %v148, %v140
  %v153 = vmul.f32 %v149, %v141
  %vm154 = vcmp.ge.s32.totalorder %v15, 0
  %vm155 = vcmp.ge.s32.totalorder %v16, 0
  %vm156 = vcmp.ge.s32.totalorder %v17, 0
  %vm157 = vcmp.ge.s32.totalorder %v18, 0
  %v158 = vsel %vm154, %v150, 0.0
  %v159 = vsel %vm155, %v151, 0.0
  %v160 = vsel %vm156, %v152, 0.0
  %v161 = vsel %vm157, %v153, 0.0
  %vm162 = vcmask 7168
  %163 = vst.msk [vmem:[%s2] sm:$0xff] %vm162, %v158
  %164 = vst.msk [vmem:[%s2 + $0x8] sm:$0xff] %vm162, %v159
  %165 = vst.msk [vmem:[%s2 + $0x10] sm:$0xff] %vm162, %v160
  %166 = vst.msk [vmem:[%s2 + $0x18] sm:$0xff] %vm162, %v161
  // Predicated region
  $region10: #{tpu_custom_call.1} parent=0 // pred_check
    _
  $region11: #{tpu_custom_call.1} parent=0 // pred_check_branch
    %168 = sbr.rel (0) target = $region13
  $region12: #{tpu_custom_call.1} parent=0 // pred_region
    _
  $region13: #{tpu_custom_call.1} parent=0 // pred_fallthru
    _
  // Predicated region
  $region14: #{tpu_custom_call.1} parent=0 // pred_check
    _
  $region15: #{tpu_custom_call.1} parent=0 // pred_check_branch
    %170 = sbr.rel (0) target = $region17
  $region16: #{tpu_custom_call.1} parent=0 // pred_region
    _
  $region17: #{tpu_custom_call.1} parent=0 // pred_fallthru
    _

</llo_original>
